<compile_context>
chip_gen: v7x
topology: tpu7x:2x2x1
jax: 0.10.0
libtpu: 0.0.40
codegen_flags: <defaults>
</compile_context>

<pallas_src>
import jax
import jax.numpy as jnp
from jax.experimental import pallas as pl
from jax.experimental.pallas import tpu as pltpu


PACK = 8        # logical rows packed per lane-dense row (8 * 16 = 128 lanes)
TM_PACK = 512   # packed rows per grid step (= 4096 logical rows per tile)


def _add_combine_kernel(feat_ref, hid_ref, w_ref, b_ref, o_ref):
    """Fused: feat_packed @ W_blockdiag + b_tiled + hidden_packed.

    feat_ref: (tm, PACK*feat_dim)   lane-dense packed features
    hid_ref : (tm, PACK*hidden_dim) lane-dense packed residual
    w_ref   : (PACK*feat_dim, PACK*hidden_dim) block-diagonal fused weight
    b_ref   : (1, PACK*hidden_dim)  tiled fused bias
    o_ref   : (tm, PACK*hidden_dim)
    Dropout layers are identity in eval mode, so they are omitted.
    """
    # TODO(synk): training-mode dropout (random masking) not implemented; eval no-op.
    h = jnp.dot(feat_ref[...], w_ref[...], preferred_element_type=jnp.float32)
    o_ref[...] = (h + b_ref[...] + hid_ref[...]).astype(o_ref.dtype)


def add_combine(hidden, feat, params):
    """hidden: [B, S, hidden_dim], feat: [B, S, feat_dim] -> [B, S, hidden_dim]."""
    B, S, hidden_dim = hidden.shape
    feat_dim = feat.shape[-1]
    w1, b1, w2, b2 = params["w1"], params["b1"], params["w2"], params["b2"]

    # --- Fuse the two linears (exact; dropout is an eval identity). ---
    w_fused = jnp.dot(w1, w2)              # (feat_dim, hidden_dim)
    b_fused = jnp.dot(b1, w2) + b2         # (1, hidden_dim)

    # --- Lane-dense block-diagonal packing (PACK logical rows per vreg row). ---
    w_bd = jnp.kron(jnp.eye(PACK, dtype=w_fused.dtype), w_fused)   # (128, 256)
    b_bd = jnp.tile(b_fused, (1, PACK))                            # (1, 256)

    M = B * S
    rows = pl.cdiv(M, PACK)                # packed rows needed
    if rows <= TM_PACK:
        tm = max(rows, 1)                  # single tile = full array (no (8,) req.)
        rows_p = tm
        grid = 1
    else:
        tm = TM_PACK                       # multiple of 8 -> valid sublane tile
        rows_p = pl.cdiv(rows, TM_PACK) * TM_PACK
        grid = rows_p // TM_PACK
    Mp = rows_p * PACK

    feat2d = feat.reshape(M, feat_dim)
    hid2d = hidden.reshape(M, hidden_dim)
    if Mp != M:
        feat2d = jnp.pad(feat2d, ((0, Mp - M), (0, 0)))
        hid2d = jnp.pad(hid2d, ((0, Mp - M), (0, 0)))

    feat_p = feat2d.reshape(rows_p, PACK * feat_dim)     # contiguous reshape
    hid_p = hid2d.reshape(rows_p, PACK * hidden_dim)     # contiguous reshape

    out_p = pl.pallas_call(
        _add_combine_kernel,
        out_shape=jax.ShapeDtypeStruct((rows_p, PACK * hidden_dim), hidden.dtype),
        grid_spec=pltpu.PrefetchScalarGridSpec(
            num_scalar_prefetch=0,
            grid=(grid,),
            in_specs=[
                pl.BlockSpec((tm, PACK * feat_dim), lambda i: (i, 0)),    # feat (streamed)
                pl.BlockSpec((tm, PACK * hidden_dim), lambda i: (i, 0)),  # hidden (streamed)
                pl.BlockSpec((PACK * feat_dim, PACK * hidden_dim),
                             lambda i: (0, 0)),                           # W (resident)
                pl.BlockSpec((1, PACK * hidden_dim), lambda i: (0, 0)),   # b (resident)
            ],
            out_specs=pl.BlockSpec((tm, PACK * hidden_dim), lambda i: (i, 0)),
        ),
        compiler_params=pltpu.CompilerParams(
            dimension_semantics=("parallel",),
            vmem_limit_bytes=64 << 20,
        ),
    )(feat_p, hid_p, w_bd, b_bd)

    out2d = out_p.reshape(Mp, hidden_dim)[:M]
    return out2d.reshape(B, S, hidden_dim)


def init_params(key, feat_dim, hidden_dim, small=False):
    """Deterministic init of the `expand` Sequential (layers=2)."""
    waist = min(feat_dim, hidden_dim) if small else max(feat_dim, hidden_dim)
    k1, k2, k3, k4 = jax.random.split(key, 4)
    s1 = 1.0 / jnp.sqrt(feat_dim)
    s2 = 1.0 / jnp.sqrt(waist)
    return {
        "w1": jax.random.uniform(k1, (feat_dim, waist), jnp.float32, -s1, s1),
        "b1": jax.random.uniform(k2, (1, waist), jnp.float32, -s1, s1),
        "w2": jax.random.uniform(k3, (waist, hidden_dim), jnp.float32, -s2, s2),
        "b2": jax.random.uniform(k4, (1, hidden_dim), jnp.float32, -s2, s2),
    }


def add_combine_ref(hidden, feat, params):
    """Pure-JAX reference (unfused two-linear path) for correctness check."""
    h1 = feat @ params["w1"] + params["b1"][0]
    h2 = h1 @ params["w2"] + params["b2"][0]
    return h2 + hidden


if __name__ == "__main__":
    feat_dim, hidden_dim = 16, 32
    key = jax.random.PRNGKey(0)
    kp, kh, kf, kh2, kf2 = jax.random.split(key, 5)
    params = init_params(kp, feat_dim, hidden_dim, small=False)

    # --- Small test (single-tile path). ---
    B, S = 2, 8
    hidden = jax.random.normal(kh, (B, S, hidden_dim), jnp.float32)
    feat = jax.random.normal(kf, (B, S, feat_dim), jnp.float32)
    out = add_combine(hidden, feat, params)
    jax.block_until_ready(out)
    ref = add_combine_ref(hidden, feat, params)
    assert out.shape == (B, S, hidden_dim)
    assert jnp.allclose(out, ref, atol=1e-4, rtol=1e-4), "mismatch vs reference (small)"

    # --- Larger test exercising the multi-tile (grid > 1) + padding path. ---
    B2, S2 = 3, 1500   # M = 4500 -> 563 packed rows -> padded to 1024, grid = 2
    hidden2 = jax.random.normal(kh2, (B2, S2, hidden_dim), jnp.float32)
    feat2 = jax.random.normal(kf2, (B2, S2, feat_dim), jnp.float32)
    out2 = add_combine(hidden2, feat2, params)
    jax.block_until_ready(out2)
    ref2 = add_combine_ref(hidden2, feat2, params)
    assert out2.shape == (B2, S2, hidden_dim)
    assert jnp.allclose(out2, ref2, atol=1e-4, rtol=1e-4), "mismatch vs reference (tiled)"

    print("KERNEL_OK")
</pallas_src>

<mosaic_0001>
module attributes {stable_mosaic.version = 11 : i64} {
  func.func @_add_combine_kernel(%arg0: i32, %arg1: memref<2x128xf32, #tpu.memory_space<vmem>>, %arg2: memref<2x256xf32, #tpu.memory_space<vmem>>, %arg3: memref<128x256xf32, #tpu.memory_space<vmem>>, %arg4: memref<1x256xf32, #tpu.memory_space<vmem>>, %arg5: memref<2x256xf32, #tpu.memory_space<vmem>>) attributes {dimension_semantics = [#tpu.dimension_semantics<parallel>], iteration_bounds = array<i64: 1>, scalar_prefetch = 0 : i64, scratch_operands = 0 : i64, tpu.core_type = #tpu.core_type<tc>, window_params = [{transform_indices = @transform_0, window_bounds = array<i64: 2, 128>}, {transform_indices = @transform_1, window_bounds = array<i64: 2, 256>}, {pipeline_mode = #tpu.pipeline_mode<synchronous>, transform_indices = @transform_2, window_bounds = array<i64: 128, 256>}, {pipeline_mode = #tpu.pipeline_mode<synchronous>, transform_indices = @transform_3, window_bounds = array<i64: 1, 256>}, {transform_indices = @transform_4, window_bounds = array<i64: 2, 256>}]} {
    %c0 = arith.constant 0 : index
    %c0_0 = arith.constant 0 : index
    %0 = vector.load %arg1[%c0, %c0_0] : memref<2x128xf32, #tpu.memory_space<vmem>>, vector<2x128xf32>
    %c0_1 = arith.constant 0 : index
    %c0_2 = arith.constant 0 : index
    %1 = vector.load %arg3[%c0_1, %c0_2] : memref<128x256xf32, #tpu.memory_space<vmem>>, vector<128x256xf32>
    %cst = arith.constant dense<0.000000e+00> : vector<2x256xf32>
    %2 = tpu.matmul %0, %1, %cst {dimension_numbers = #tpu.dot_dimension_numbers<[1], [0], [0], [1], [0, 0, 1, 1], [], []>} : vector<2x128xf32>, vector<128x256xf32>, vector<2x256xf32> -> vector<2x256xf32>
    %c0_3 = arith.constant 0 : index
    %c0_4 = arith.constant 0 : index
    %3 = vector.load %arg4[%c0_3, %c0_4] : memref<1x256xf32, #tpu.memory_space<vmem>>, vector<1x256xf32>
    %4 = vector.broadcast %3 : vector<1x256xf32> to vector<2x256xf32>
    %5 = arith.addf %2, %4 : vector<2x256xf32>
    %c0_5 = arith.constant 0 : index
    %c0_6 = arith.constant 0 : index
    %6 = vector.load %arg2[%c0_5, %c0_6] : memref<2x256xf32, #tpu.memory_space<vmem>>, vector<2x256xf32>
    %7 = arith.addf %5, %6 : vector<2x256xf32>
    %c0_7 = arith.constant 0 : index
    %c0_8 = arith.constant 0 : index
    %8 = vector.load %arg5[%c0_7, %c0_8] : memref<2x256xf32, #tpu.memory_space<vmem>>, vector<2x256xf32>
    tpu.vector_store %arg5[%c0_7, %c0_8], %7 {strides = array<i32>} : memref<2x256xf32, #tpu.memory_space<vmem>>, vector<2x256xf32>,
    return
  }
  func.func @transform_0(%arg0: i32) -> (i32, i32) {
    %c0_i32 = arith.constant 0 : i32
    %c0_i32_0 = arith.constant 0 : i32
    return %arg0, %c0_i32 : i32, i32
  }
  func.func @transform_1(%arg0: i32) -> (i32, i32) {
    %c0_i32 = arith.constant 0 : i32
    %c0_i32_0 = arith.constant 0 : i32
    return %arg0, %c0_i32 : i32, i32
  }
  func.func @transform_2(%arg0: i32) -> (i32, i32) {
    %c0_i32 = arith.constant 0 : i32
    %c0_i32_0 = arith.constant 0 : i32
    %c0_i32_1 = arith.constant 0 : i32
    return %c0_i32, %c0_i32_0 : i32, i32
  }
  func.func @transform_3(%arg0: i32) -> (i32, i32) {
    %c0_i32 = arith.constant 0 : i32
    %c0_i32_0 = arith.constant 0 : i32
    %c0_i32_1 = arith.constant 0 : i32
    return %c0_i32, %c0_i32_0 : i32, i32
  }
  func.func @transform_4(%arg0: i32) -> (i32, i32) {
    %c0_i32 = arith.constant 0 : i32
    %c0_i32_0 = arith.constant 0 : i32
    return %arg0, %c0_i32 : i32, i32
  }
}

</mosaic_0001>

<llo_original>
// kernel: tpu_custom_call.1
$region0: #{tpu_custom_call.1}
  #allocation0 [shape = 'u32[]', space=smem, size = 0x4, offset = 0x4, fixed_abs, tag = 'smem constant byte address 0x4 - core index']
  #allocation1 [shape = 'u32[144,128]{1,0:T(1,128)}', space=vmem, size = 0x12000, scoped, tag = 'internal scratch']
  %s0 = inlined_call_operand.hbm [shape: f32[2,128], index: 0, kind: input, shape index: {}]
  %s1 = inlined_call_operand.hbm [shape: f32[2,256], index: 1, kind: input, shape index: {}]
  %s2 = inlined_call_operand.hbm [shape: f32[128,256], index: 2, kind: input, shape index: {}]
  %s3 = inlined_call_operand.hbm [shape: f32[1,256], index: 3, kind: input, shape index: {}]
  %s4 = inlined_call_operand.hbm [shape: f32[2,256], index: 4, kind: output, shape index: {}]
  %s5 = sld [smem:[#allocation0]]
  $region42: #{tpu_custom_call.1} parent=0
    _
  %s7 = ssub.s32 1, %s5
  %s8 = scalar_select 0, %s7, %s5
  $region1: #{tpu_custom_call.1} parent=0
    #allocation2 [shape = 'u8[1024]{0}', space=vmem, size = 0x400, scoped, tag = 'input window, operand 0, single buffered']
    #allocation3 [shape = 's32[1]{0}', space=sflag, size = 0x4, scoped, tag = 'scoped memory for tpu_custom_call.1']
    #allocation4 [shape = 's32[1]{0}', space=sflag, size = 0x4, scoped, tag = 'scoped memory for tpu_custom_call.1']
    #allocation5 [shape = 'u8[2048]{0}', space=vmem, size = 0x800, scoped, tag = 'input window, operand 1, single buffered']
    #allocation6 [shape = 's32[1]{0}', space=sflag, size = 0x4, scoped, tag = 'scoped memory for tpu_custom_call.1']
    #allocation7 [shape = 'u8[131072]{0}', space=vmem, size = 0x20000, scoped, tag = 'input window, operand 2, single buffered']
    #allocation8 [shape = 'u8[1024]{0}', space=vmem, size = 0x400, scoped, tag = 'input window, operand 3, single buffered']
    #allocation9 [shape = 's32[1]{0}', space=sflag, size = 0x4, scoped, tag = 'scoped memory for tpu_custom_call.1']
    #allocation10 [shape = 'u8[2048]{0}', space=vmem, size = 0x800, scoped, tag = 'output window, operand 0, single buffered']
    %9 = vsyncpa [#allocation3], 0
    %10 = vsyncpa [#allocation6], 0
    %11 = vsyncpa [#allocation9], 0
    %12 = vsyncpa [#allocation4], 0
    // Predicated region
    $region2: #{tpu_custom_call.1} parent=1 // pred_check
      _
    $region3: #{tpu_custom_call.1} parent=1 // pred_check_branch
      %14 = sbr.rel (0) target = $region5
    $region4: #{tpu_custom_call.1} parent=1 // pred_region
      %s16 = ssub.s32 32, 32
      %17 = vsyncadd [#allocation3], %s16
      %s19 = sshll.u32 [#allocation2], 4
      %s20 = int_to_ptr.vmem [resolvable:$true] %s19
      %22 = dma.hbm_to_vmem [thread:$0]  %s0, 32, %s20, [#allocation3]
    $region5: #{tpu_custom_call.1} parent=1 // pred_fallthru
      _
    // Predicated region
    $region6: #{tpu_custom_call.1} parent=1 // pred_check
      _
    $region7: #{tpu_custom_call.1} parent=1 // pred_check_branch
      %24 = sbr.rel (0) target = $region9
    $region8: #{tpu_custom_call.1} parent=1 // pred_region
      %s26 = ssub.s32 64, 64
      %27 = vsyncadd [#allocation6], %s26
      %s29 = sshll.u32 [#allocation5], 4
      %s30 = int_to_ptr.vmem [resolvable:$true] %s29
      %32 = dma.hbm_to_vmem [thread:$0]  %s1, 64, %s30, [#allocation6]
    $region9: #{tpu_custom_call.1} parent=1 // pred_fallthru
      _
    // Predicated region
    $region10: #{tpu_custom_call.1} parent=1 // pred_check
      _
    $region11: #{tpu_custom_call.1} parent=1 // pred_check_branch
      %34 = sbr.rel (0) target = $region13
    $region12: #{tpu_custom_call.1} parent=1 // pred_region
      %s36 = ssub.s32 4096, 4096
      %37 = vsyncadd [#allocation6], %s36
      %s38 = sshll.u32 [#allocation7], 4
      %s39 = int_to_ptr.vmem [resolvable:$true] %s38
      %44 = dma.hbm_to_vmem [thread:$0]  %s2, 4096, %s39, [#allocation6], 256, 256, 16
    $region13: #{tpu_custom_call.1} parent=1 // pred_fallthru
      _
    // Predicated region
    $region14: #{tpu_custom_call.1} parent=1 // pred_check
      _
    $region15: #{tpu_custom_call.1} parent=1 // pred_check_branch
      %46 = sbr.rel (0) target = $region17
    $region16: #{tpu_custom_call.1} parent=1 // pred_region
      %s48 = ssub.s32 32, 32
      %49 = vsyncadd [#allocation9], %s48
      %s51 = sshll.u32 [#allocation8], 4
      %s52 = int_to_ptr.vmem [resolvable:$true] %s51
      %54 = dma.hbm_to_vmem [thread:$0]  %s3, 32, %s52, [#allocation9]
    $region17: #{tpu_custom_call.1} parent=1 // pred_fallthru
      _
    // Predicated region
    $region18: #{tpu_custom_call.1} parent=1 // pred_check
      _
    $region19: #{tpu_custom_call.1} parent=1 // pred_check_branch
      %56 = sbr.rel (0) target = $region21
    $region20: #{tpu_custom_call.1} parent=1 // pred_region
      %57 = dma.done [#allocation3], 32
    $region21: #{tpu_custom_call.1} parent=1 // pred_fallthru
      _
    // Predicated region
    $region22: #{tpu_custom_call.1} parent=1 // pred_check
      _
    $region23: #{tpu_custom_call.1} parent=1 // pred_check_branch
      %59 = sbr.rel (0) target = $region25
    $region24: #{tpu_custom_call.1} parent=1 // pred_region
      %60 = dma.done [#allocation6], 64
    $region25: #{tpu_custom_call.1} parent=1 // pred_fallthru
      _
    // Predicated region
    $region26: #{tpu_custom_call.1} parent=1 // pred_check
      _
    $region27: #{tpu_custom_call.1} parent=1 // pred_check_branch
      %62 = sbr.rel (0) target = $region29
    $region28: #{tpu_custom_call.1} parent=1 // pred_region
      %63 = dma.done [#allocation6], 4096
    $region29: #{tpu_custom_call.1} parent=1 // pred_fallthru
      _
    // Predicated region
    $region30: #{tpu_custom_call.1} parent=1 // pred_check
      _
    $region31: #{tpu_custom_call.1} parent=1 // pred_check_branch
      %65 = sbr.rel (0) target = $region33
    $region32: #{tpu_custom_call.1} parent=1 // pred_region
      %66 = dma.done [#allocation9], 32
    $region33: #{tpu_custom_call.1} parent=1 // pred_fallthru
      _
    %v67 = vld [vmem:[#allocation2] sm:$0x3]
    %v68 = vld [vmem:[#allocation7] sm:$0xff]
    %v69 = vld [vmem:[#allocation7 + $0x8] sm:$0xff]
    %v70 = vld [vmem:[#allocation7 + $0x10] sm:$0xff]
    %v71 = vld [vmem:[#allocation7 + $0x18] sm:$0xff]
    %v72 = vld [vmem:[#allocation7 + $0x20] sm:$0xff]
    %v73 = vld [vmem:[#allocation7 + $0x28] sm:$0xff]
    %v74 = vld [vmem:[#allocation7 + $0x30] sm:$0xff]
    %v75 = vld [vmem:[#allocation7 + $0x38] sm:$0xff]
    %v76 = vld [vmem:[#allocation7 + $0x40] sm:$0xff]
    %v77 = vld [vmem:[#allocation7 + $0x48] sm:$0xff]
    %v78 = vld [vmem:[#allocation7 + $0x50] sm:$0xff]
    %v79 = vld [vmem:[#allocation7 + $0x58] sm:$0xff]
    %v80 = vld [vmem:[#allocation7 + $0x60] sm:$0xff]
    %v81 = vld [vmem:[#allocation7 + $0x68] sm:$0xff]
    %v82 = vld [vmem:[#allocation7 + $0x70] sm:$0xff]
    %v83 = vld [vmem:[#allocation7 + $0x78] sm:$0xff]
    %v84 = vld [vmem:[#allocation7 + $0x80] sm:$0xff]
    %v85 = vld [vmem:[#allocation7 + $0x88] sm:$0xff]
    %v86 = vld [vmem:[#allocation7 + $0x90] sm:$0xff]
    %v87 = vld [vmem:[#allocation7 + $0x98] sm:$0xff]
    %v88 = vld [vmem:[#allocation7 + $0xa0] sm:$0xff]
    %v89 = vld [vmem:[#allocation7 + $0xa8] sm:$0xff]
    %v90 = vld [vmem:[#allocation7 + $0xb0] sm:$0xff]
    %v91 = vld [vmem:[#allocation7 + $0xb8] sm:$0xff]
    %v92 = vld [vmem:[#allocation7 + $0xc0] sm:$0xff]
    %v93 = vld [vmem:[#allocation7 + $0xc8] sm:$0xff]
    %v94 = vld [vmem:[#allocation7 + $0xd0] sm:$0xff]
    %v95 = vld [vmem:[#allocation7 + $0xd8] sm:$0xff]
    %v96 = vld [vmem:[#allocation7 + $0xe0] sm:$0xff]
    %v97 = vld [vmem:[#allocation7 + $0xe8] sm:$0xff]
    %v98 = vld [vmem:[#allocation7 + $0xf0] sm:$0xff]
    %v99 = vld [vmem:[#allocation7 + $0xf8] sm:$0xff]
    %v100 = vld [vmem:[#allocation8] sm:$0x3]
    %v102 = vlaneseq
    %v103 = vshrl.u32 %v102, 7
    %v104 = vsub.s32 0, %v103
    %v105 = vrot.slane %v100, %v104
    %v106 = vlaneseq
    %v107 = vshrl.u32 %v106, 7
    %v108 = vsub.s32 1, %v107
    %v109 = vrot.slane %v100, %v108
    %112 = vmatprep.subr.mxu0 %v69
    %113 = vmatpush1.msra.mxu0 %v68
    %114 = vmatprep.subr.mxu0 %v71
    %115 = vmatpush1.msra.mxu0 %v70
    %116 = vmatprep.subr.mxu0 %v73
    %117 = vmatpush1.msra.mxu0 %v72
    %118 = vmatprep.subr.mxu0 %v75
    %119 = vmatpush1.msra.mxu0 %v74
    %120 = vmatprep.subr.mxu0 %v77
    %121 = vmatpush1.msra.mxu0 %v76
    %122 = vmatprep.subr.mxu0 %v79
    %123 = vmatpush1.msra.mxu0 %v78
    %124 = vmatprep.subr.mxu0 %v81
    %125 = vmatpush1.msra.mxu0 %v80
    %126 = vmatprep.subr.mxu0 %v83
    %127 = vmatpush1.msra.mxu0 %v82
    %128 = vmatprep.subr.mxu0 %v85
    %129 = vmatpush1.msra.mxu0 %v84
    %130 = vmatprep.subr.mxu0 %v87
    %131 = vmatpush1.msra.mxu0 %v86
    %132 = vmatprep.subr.mxu0 %v89
    %133 = vmatpush1.msra.mxu0 %v88
    %134 = vmatprep.subr.mxu0 %v91
    %135 = vmatpush1.msra.mxu0 %v90
    %136 = vmatprep.subr.mxu0 %v93
    %137 = vmatpush1.msra.mxu0 %v92
    %138 = vmatprep.subr.mxu0 %v95
    %139 = vmatpush1.msra.mxu0 %v94
    %140 = vmatprep.subr.mxu0 %v97
    %141 = vmatpush1.msra.mxu0 %v96
    %142 = vmatprep.subr.mxu0 %v99
    %143 = vmatpush1.msra.mxu0 %v98
    %144 = vmatprep.subr.mxu0 0.0
    %145 = vmatpush1.msra.mxu0 0.0
    %146 = vmatprep.subr.mxu0 0.0
    %147 = vmatpush1.msra.mxu0 0.0
    %148 = vmatprep.subr.mxu0 0.0
    %149 = vmatpush1.msra.mxu0 0.0
    %150 = vmatprep.subr.mxu0 0.0
    %151 = vmatpush1.msra.mxu0 0.0
    %152 = vmatprep.subr.mxu0 0.0
    %153 = vmatpush1.msra.mxu0 0.0
    %154 = vmatprep.subr.mxu0 0.0
    %155 = vmatpush1.msra.mxu0 0.0
    %156 = vmatprep.subr.mxu0 0.0
    %157 = vmatpush1.msra.mxu0 0.0
    %158 = vmatprep.subr.mxu0 0.0
    %159 = vmatpush1.msra.mxu0 0.0
    %160 = vmatprep.subr.mxu0 0.0
    %161 = vmatpush1.msra.mxu0 0.0
    %162 = vmatprep.subr.mxu0 0.0
    %163 = vmatpush1.msra.mxu0 0.0
    %164 = vmatprep.subr.mxu0 0.0
    %165 = vmatpush1.msra.mxu0 0.0
    %166 = vmatprep.subr.mxu0 0.0
    %167 = vmatpush1.msra.mxu0 0.0
    %168 = vmatprep.subr.mxu0 0.0
    %169 = vmatpush1.msra.mxu0 0.0
    %170 = vmatprep.subr.mxu0 0.0
    %171 = vmatpush1.msra.mxu0 0.0
    %172 = vmatprep.subr.mxu0 0.0
    %173 = vmatpush1.msra.mxu0 0.0
    %174 = vmatprep.subr.mxu0 0.0
    %175 = vmatpush1.msra.mxu0 0.0
    %176 = vmatprep.mubr.f32.mxu0 0.0
    %177 = vmatmul.mubr.f32.gmra.mrb[0].mxu0 %v67
    %v178 = vpop.f32.mrb[0].mxu0
    %v179 = vadd.f32 %v105, %v178
    %v180 = vpop.f32.mrb[0].mxu0
    %v181 = vadd.f32 %v109, %v180
    %182 = vdwg.mxu0
    %v183 = vld [vmem:[#allocation5] sm:$0xf]
    %v186 = vunpack.c.l.s4 1983009808
    %v187 = vunpack.c.0.s8 %v186
    %v188 = vlaneseq
    %v189 = vshrl.u32 %v188, 7
    %v190 = vsub.s32 %v187, %v189
    %v191 = vrot.slane %v183, %v190
    %v192 = vcombine.high %v191, %v191
    %v195 = vadd.f32 %v179, %v191
    %v196 = vadd.f32 %v181, %v192
    %v199 = vcombine.low %v195, %v196
    %v201 = vunpack.c.l.s4 1983009808
    %v202 = vunpack.c.0.s8 %v201
    %v203 = vlaneseq
    %v204 = vshrl.u32 %v203, 7
    %v205 = vsub.s32 %v202, %v204
    %v206 = vrot.slane %v199, %v205
    %208 = vst [vmem:[#allocation10] sm:$0xf] %v206
    // Predicated region
    $region34: #{tpu_custom_call.1} parent=1 // pred_check
      _
    $region35: #{tpu_custom_call.1} parent=1 // pred_check_branch
      %210 = sbr.rel (0) target = $region37
    $region36: #{tpu_custom_call.1} parent=1 // pred_region
      %s212 = ssub.s32 64, 64
      %213 = vsyncadd [#allocation4], %s212
      %s215 = sshll.u32 [#allocation10], 4
      %s216 = int_to_ptr.vmem [resolvable:$true] %s215
      %218 = dma.vmem_to_hbm [thread:$0]  %s216, 64, %s4, [#allocation4]
    $region37: #{tpu_custom_call.1} parent=1 // pred_fallthru
      _
    // Predicated region
    $region38: #{tpu_custom_call.1} parent=1 // pred_check
      _
    $region39: #{tpu_custom_call.1} parent=1 // pred_check_branch
      %220 = sbr.rel (0) target = $region41
    $region40: #{tpu_custom_call.1} parent=1 // pred_region
      %221 = dma.done [#allocation4], 64
    $region41: #{tpu_custom_call.1} parent=1 // pred_fallthru
      _
    %222 = vsyncpa [#allocation3], 1
    %223 = vsyncpa [#allocation6], 1
    %224 = vsyncpa [#allocation9], 1
    %225 = vsyncpa [#allocation4], 1

</llo_original>
